<compile_context>
chip_gen: v7x
topology: tpu7x:2x2x1
jax: 0.10.0
libtpu: 0.0.40
codegen_flags: <defaults>
</compile_context>

<pallas_src>
from functools import partial

import jax
import jax.numpy as jnp
from jax import lax
from jax.experimental import pallas as pl
from jax.experimental.pallas import tpu as pltpu

_LANES = 128              # vreg lane width
_SUBLANES = 8             # f32 vreg sublane count
_UNROLL_CLASS_LIMIT = 64  # python-unroll the class loop up to this many classes


def _int_pow(x, g: int):
    """x ** g for non-negative integer g using only VPU multiplies (no EUP pow)."""
    if g == 0:
        return jnp.ones_like(x)
    result = None
    base = x
    while g > 0:
        if g & 1:
            result = base if result is None else result * base
        g >>= 1
        if g:
            base = base * base
    return result


def _focal_loss_kernel(*refs, class_num, gamma, reduced, has_alpha,
                       n_total, samples_per_tile, needs_mask):
    if has_alpha:
        pred_ref, tgt_ref, alpha_ref, out_ref = refs
    else:
        pred_ref, tgt_ref, out_ref = refs
        alpha_ref = None

    C = class_num
    tgt = tgt_ref[...]                       # (S, L) int32
    S, L = tgt.shape

    # ---- class-axis reductions as dense (S, L) VPU passes over the leading
    # (untiled) axis: max, sum(exp), target-logit select, alpha[target] select.
    if C <= _UNROLL_CLASS_LIMIT:
        # Static unroll: every temporary is a dense (S, L) tile.
        m = pred_ref[0]
        for c in range(1, C):
            m = jnp.maximum(m, pred_ref[c])

        sum_exp = None
        logit_t = None
        alpha_t = None
        for c in range(C):
            xc = pred_ref[c]
            e = jnp.exp(xc - m)
            sum_exp = e if sum_exp is None else sum_exp + e
            sel = tgt == c
            logit_t = jnp.where(sel, xc, 0.0 if logit_t is None else logit_t)
            if has_alpha:
                a_c = alpha_ref[c]           # scalar from SMEM
                alpha_t = jnp.where(sel, a_c,
                                    0.0 if alpha_t is None else alpha_t)
    else:
        # Large class counts: loop over classes, still dense (S, L) temporaries.
        def _max_body(c, m_):
            return jnp.maximum(m_, pred_ref[c])

        m = lax.fori_loop(1, C, _max_body, pred_ref[0])

        def _acc_body(c, carry):
            sum_exp_, logit_t_, alpha_t_ = carry
            xc = pred_ref[c]
            sum_exp_ = sum_exp_ + jnp.exp(xc - m)
            sel = tgt == c
            logit_t_ = jnp.where(sel, xc, logit_t_)
            if has_alpha:
                alpha_t_ = jnp.where(sel, alpha_ref[c], alpha_t_)
            return sum_exp_, logit_t_, alpha_t_

        zeros = jnp.zeros((S, L), jnp.float32)
        sum_exp, logit_t, alpha_t = lax.fori_loop(0, C, _acc_body,
                                                  (zeros, zeros, zeros))

    # ---- log-sum-exp softmax at the target class (no divide, no log(p)) ----
    lse = m + jnp.log(sum_exp)               # (S, L)
    log_p = logit_t - lse                    # log softmax[target]
    probs = jnp.exp(log_p)
    one_m_p = 1.0 - probs
    if float(gamma) == int(gamma) and int(gamma) >= 0:
        focal = _int_pow(one_m_p, int(gamma))   # VPU multiplies only
    else:
        focal = jnp.power(one_m_p, float(gamma))
    loss = focal * log_p
    if has_alpha:
        loss = alpha_t * loss
    loss = -loss                              # (S, L)

    if reduced:
        # Per-tile partial sum, broadcast into this tile's own (8, 128) block
        # (grid axis stays 'parallel'); host sums the partials.
        if not needs_mask:
            tile_sum = jnp.sum(loss, keepdims=True)           # (1, 1)
            out_ref[...] = jnp.broadcast_to(tile_sum, (_SUBLANES, _LANES))
        else:
            i = pl.program_id(0)
            last = pl.num_programs(0) - 1

            @pl.when(i != last)
            def _():
                tile_sum = jnp.sum(loss, keepdims=True)
                out_ref[...] = jnp.broadcast_to(tile_sum, (_SUBLANES, _LANES))

            @pl.when(i == last)
            def _():
                # Only the last tile carries batch padding -> mask it here.
                base = i * samples_per_tile
                s_idx = lax.broadcasted_iota(jnp.int32, (S, L), 0)
                l_idx = lax.broadcasted_iota(jnp.int32, (S, L), 1)
                idx = base + s_idx * L + l_idx
                masked = jnp.where(idx < n_total, loss, 0.0)
                tile_sum = jnp.sum(masked, keepdims=True)
                out_ref[...] = jnp.broadcast_to(tile_sum, (_SUBLANES, _LANES))
    else:
        out_ref[...] = loss                  # lane-dense (S, 128) tile


def multi_ce_focal_loss(predict, target, *, class_num, gamma=2, alpha=None,
                        reduction="mean", tile_sub=None, class_major=False):
    """JAX/Pallas equivalent of MultiCEFocalLoss.forward.

    predict: (N, class_num) logits, or (class_num, N) if class_major=True.
    target : (N,) integer class indices.
    Returns a scalar for reduction in ('mean', 'sum'), else an (N, 1) array.
    """
    if class_major:
        C, N = predict.shape
        predict_t = predict.astype(jnp.float32)                 # (C, N)
    else:
        N, C = predict.shape
        # Class-major layout keeps the batch on the 128-wide lane axis inside
        # the kernel; allow_input_fusion (below) lets XLA fold this
        # convert/transpose/pad producer into the Pallas input copy.
        predict_t = jnp.transpose(predict.astype(jnp.float32))  # (C, N)
    assert C == class_num, "class axis must equal class_num"

    # Pad the batch only up to a multiple of 8*128 = 1024 so the free host
    # reshape to (C, R, 128) yields fully (8,128)-tileable blocks.
    align = _SUBLANES * _LANES
    n_pad = pl.cdiv(N, align) * align
    R = n_pad // _LANES                      # number of 128-wide sample rows

    target_i = target.astype(jnp.int32)
    if n_pad != N:
        predict_t = jnp.pad(predict_t, ((0, 0), (0, n_pad - N)))
        target_i = jnp.pad(target_i, (0, n_pad - N))

    pred3 = predict_t.reshape(C, R, _LANES)  # free reshape
    tgt2 = target_i.reshape(R, _LANES)       # free reshape

    # Tile size: ~2 MiB of logits per block (per pipeline buffer).  The
    # double-buffered working set stays ~10 MiB -- inside the scoped-VMEM
    # budget on v5e/v6e/v7x -- while each step moves enough bytes to amortise
    # the ~0.35 us per-grid-step overhead (128K+ samples/step for small C).
    if tile_sub is None:
        budget_elems = 512 * 1024                            # f32 elems/block
        tile_sub = (budget_elems // (C * _LANES)) // _SUBLANES * _SUBLANES
        tile_sub = max(_SUBLANES, min(tile_sub, 2048))
    tile_sub = max(_SUBLANES, min(int(tile_sub), R))
    tile_sub = (tile_sub // _SUBLANES) * _SUBLANES

    num_tiles = pl.cdiv(R, tile_sub)
    samples_per_tile = tile_sub * _LANES
    needs_mask = (num_tiles * samples_per_tile) != N
    reduced = reduction in ("mean", "sum")
    has_alpha = alpha is not None

    inputs = [pred3, tgt2]
    in_specs = [
        pl.BlockSpec((C, tile_sub, _LANES), lambda i: (0, i, 0)),
        pl.BlockSpec((tile_sub, _LANES), lambda i: (i, 0)),
    ]
    if has_alpha:
        # Tiny per-class table -> SMEM; read as scalars inside the class loop.
        alpha_arr = jnp.asarray(alpha, jnp.float32).reshape(C)
        inputs.append(alpha_arr)
        in_specs.append(pl.BlockSpec(memory_space=pltpu.MemorySpace.SMEM))

    if reduced:
        # Per-tile partial sums in legal (8, 128) blocks; the grid axis is
        # 'parallel' (v7x megacore splits it); host does the tiny final sum.
        out_shape = jax.ShapeDtypeStruct((num_tiles * _SUBLANES, _LANES),
                                         jnp.float32)
        out_spec = pl.BlockSpec((_SUBLANES, _LANES), lambda i: (i, 0))
    else:
        out_shape = jax.ShapeDtypeStruct((R, _LANES), jnp.float32)
        out_spec = pl.BlockSpec((tile_sub, _LANES), lambda i: (i, 0))

    kernel = partial(_focal_loss_kernel, class_num=C, gamma=gamma,
                     reduced=reduced, has_alpha=has_alpha, n_total=N,
                     samples_per_tile=samples_per_tile, needs_mask=needs_mask)

    out_bytes = 4 * (num_tiles * _SUBLANES * _LANES if reduced else R * _LANES)
    cost = pl.CostEstimate(
        flops=int(n_pad * (5 * C + 12)),
        transcendentals=int(n_pad * (C + 2)),
        bytes_accessed=int(4 * n_pad * (C + 1) + 4 * C + out_bytes))

    out = pl.pallas_call(
        kernel,
        out_shape=out_shape,
        grid=(num_tiles,),
        in_specs=in_specs,
        out_specs=out_spec,
        compiler_params=pltpu.CompilerParams(
            dimension_semantics=("parallel",),
            vmem_limit_bytes=32 * 1024 * 1024,
            allow_input_fusion=[True, True] + [False] * (len(inputs) - 2)),
        cost_estimate=cost,
    )(*inputs)

    if reduced:
        total = jnp.sum(out[::_SUBLANES, 0])     # tiny host-side reduction
        if reduction == "mean":
            total = total / jnp.float32(N)
        return total
    return out.reshape(-1)[:N].reshape(N, 1)


if __name__ == "__main__":
    key = jax.random.PRNGKey(0)
    k_pred, k_tgt = jax.random.split(key)

    N, C = 8, 4  # small shapes consistent with the module: (batch, class_num)
    predict = jax.random.normal(k_pred, (N, C), dtype=jnp.float32)
    target = jax.random.randint(k_tgt, (N,), 0, C, dtype=jnp.int32)
    alpha = jnp.array([0.25, 0.5, 0.75, 1.0], jnp.float32)

    # Pure-JAX reference mirroring the torch module.
    def ref_loss(pred, tgt, alpha_arr, gamma):
        pt = jax.nn.softmax(pred, axis=1)
        oh = jax.nn.one_hot(tgt, C, dtype=jnp.float32)
        probs = jnp.sum(pt * oh, axis=1, keepdims=True)
        a = alpha_arr[tgt].reshape(-1, 1)
        return -a * (1.0 - probs) ** gamma * jnp.log(probs)

    ref_none = ref_loss(predict, target, jnp.ones((C,), jnp.float32), 2)
    ref_none_a = ref_loss(predict, target, alpha, 2)

    loss_mean = multi_ce_focal_loss(predict, target, class_num=C, gamma=2,
                                    reduction="mean")
    jax.block_until_ready(loss_mean)
    assert jnp.allclose(loss_mean, jnp.mean(ref_none), rtol=1e-5, atol=1e-6), (
        loss_mean, jnp.mean(ref_none))

    loss_sum = multi_ce_focal_loss(predict, target, class_num=C, gamma=2,
                                   reduction="sum")
    assert jnp.allclose(loss_sum, jnp.sum(ref_none), rtol=1e-5, atol=1e-6), (
        loss_sum, jnp.sum(ref_none))

    loss_none = multi_ce_focal_loss(predict, target, class_num=C, gamma=2,
                                    reduction="none")
    jax.block_until_ready(loss_none)
    assert jnp.allclose(loss_none, ref_none, rtol=1e-5, atol=1e-6), (
        loss_none, ref_none)

    loss_mean_a = multi_ce_focal_loss(predict, target, class_num=C, gamma=2,
                                      alpha=alpha, reduction="mean")
    assert jnp.allclose(loss_mean_a, jnp.mean(ref_none_a),
                        rtol=1e-5, atol=1e-6), (loss_mean_a, jnp.mean(ref_none_a))

    print("KERNEL_OK")
</pallas_src>

<mosaic_0001>
module attributes {stable_mosaic.version = 11 : i64} {
  func.func @_focal_loss_kernel(%arg0: i32, %arg1: memref<4x8x128xf32, #tpu.memory_space<vmem>>, %arg2: memref<8x128xi32, #tpu.memory_space<vmem>>, %arg3: memref<8x128xf32, #tpu.memory_space<vmem>>) attributes {dimension_semantics = [#tpu.dimension_semantics<parallel>], iteration_bounds = array<i64: 1>, scalar_prefetch = 0 : i64, scratch_operands = 0 : i64, tpu.core_type = #tpu.core_type<tc>, window_params = [{transform_indices = @transform_0, window_bounds = array<i64: 4, 8, 128>}, {transform_indices = @transform_1, window_bounds = array<i64: 8, 128>}, {transform_indices = @transform_2, window_bounds = array<i64: 8, 128>}]} {
    %c0 = arith.constant 0 : index
    %c0_0 = arith.constant 0 : index
    %0 = vector.load %arg2[%c0, %c0_0] : memref<8x128xi32, #tpu.memory_space<vmem>>, vector<8x128xi32>
    %c0_1 = arith.constant 0 : index
    %c0_2 = arith.constant 0 : index
    %c0_3 = arith.constant 0 : index
    %1 = vector.load %arg1[%c0_1, %c0_2, %c0_3] : memref<4x8x128xf32, #tpu.memory_space<vmem>>, vector<1x8x128xf32>
    %2 = vector.shape_cast %1 : vector<1x8x128xf32> to vector<8x128xf32>
    %c1 = arith.constant 1 : index
    %c0_4 = arith.constant 0 : index
    %c0_5 = arith.constant 0 : index
    %3 = vector.load %arg1[%c1, %c0_4, %c0_5] : memref<4x8x128xf32, #tpu.memory_space<vmem>>, vector<1x8x128xf32>
    %4 = vector.shape_cast %3 : vector<1x8x128xf32> to vector<8x128xf32>
    %5 = arith.maximumf %2, %4 : vector<8x128xf32>
    %c2 = arith.constant 2 : index
    %c0_6 = arith.constant 0 : index
    %c0_7 = arith.constant 0 : index
    %6 = vector.load %arg1[%c2, %c0_6, %c0_7] : memref<4x8x128xf32, #tpu.memory_space<vmem>>, vector<1x8x128xf32>
    %7 = vector.shape_cast %6 : vector<1x8x128xf32> to vector<8x128xf32>
    %8 = arith.maximumf %5, %7 : vector<8x128xf32>
    %c3 = arith.constant 3 : index
    %c0_8 = arith.constant 0 : index
    %c0_9 = arith.constant 0 : index
    %9 = vector.load %arg1[%c3, %c0_8, %c0_9] : memref<4x8x128xf32, #tpu.memory_space<vmem>>, vector<1x8x128xf32>
    %10 = vector.shape_cast %9 : vector<1x8x128xf32> to vector<8x128xf32>
    %11 = arith.maximumf %8, %10 : vector<8x128xf32>
    %c0_10 = arith.constant 0 : index
    %c0_11 = arith.constant 0 : index
    %c0_12 = arith.constant 0 : index
    %12 = vector.load %arg1[%c0_10, %c0_11, %c0_12] : memref<4x8x128xf32, #tpu.memory_space<vmem>>, vector<1x8x128xf32>
    %13 = vector.shape_cast %12 : vector<1x8x128xf32> to vector<8x128xf32>
    %14 = arith.subf %13, %11 : vector<8x128xf32>
    %15 = math.exp %14 : vector<8x128xf32>
    %c0_i32 = arith.constant 0 : i32
    %16 = vector.broadcast %c0_i32 : i32 to vector<8x128xi32>
    %17 = arith.cmpi eq, %0, %16 : vector<8x128xi32>
    %cst = arith.constant 0.000000e+00 : f32
    %18 = vector.broadcast %cst : f32 to vector<8x128xf32>
    %19 = arith.select %17, %13, %18 : vector<8x128xi1>, vector<8x128xf32>
    %c1_13 = arith.constant 1 : index
    %c0_14 = arith.constant 0 : index
    %c0_15 = arith.constant 0 : index
    %20 = vector.load %arg1[%c1_13, %c0_14, %c0_15] : memref<4x8x128xf32, #tpu.memory_space<vmem>>, vector<1x8x128xf32>
    %21 = vector.shape_cast %20 : vector<1x8x128xf32> to vector<8x128xf32>
    %22 = arith.subf %21, %11 : vector<8x128xf32>
    %23 = math.exp %22 : vector<8x128xf32>
    %24 = arith.addf %15, %23 : vector<8x128xf32>
    %c1_i32 = arith.constant 1 : i32
    %25 = vector.broadcast %c1_i32 : i32 to vector<8x128xi32>
    %26 = arith.cmpi eq, %0, %25 : vector<8x128xi32>
    %27 = arith.select %26, %21, %19 : vector<8x128xi1>, vector<8x128xf32>
    %c2_16 = arith.constant 2 : index
    %c0_17 = arith.constant 0 : index
    %c0_18 = arith.constant 0 : index
    %28 = vector.load %arg1[%c2_16, %c0_17, %c0_18] : memref<4x8x128xf32, #tpu.memory_space<vmem>>, vector<1x8x128xf32>
    %29 = vector.shape_cast %28 : vector<1x8x128xf32> to vector<8x128xf32>
    %30 = arith.subf %29, %11 : vector<8x128xf32>
    %31 = math.exp %30 : vector<8x128xf32>
    %32 = arith.addf %24, %31 : vector<8x128xf32>
    %c2_i32 = arith.constant 2 : i32
    %33 = vector.broadcast %c2_i32 : i32 to vector<8x128xi32>
    %34 = arith.cmpi eq, %0, %33 : vector<8x128xi32>
    %35 = arith.select %34, %29, %27 : vector<8x128xi1>, vector<8x128xf32>
    %c3_19 = arith.constant 3 : index
    %c0_20 = arith.constant 0 : index
    %c0_21 = arith.constant 0 : index
    %36 = vector.load %arg1[%c3_19, %c0_20, %c0_21] : memref<4x8x128xf32, #tpu.memory_space<vmem>>, vector<1x8x128xf32>
    %37 = vector.shape_cast %36 : vector<1x8x128xf32> to vector<8x128xf32>
    %38 = arith.subf %37, %11 : vector<8x128xf32>
    %39 = math.exp %38 : vector<8x128xf32>
    %40 = arith.addf %32, %39 : vector<8x128xf32>
    %c3_i32 = arith.constant 3 : i32
    %41 = vector.broadcast %c3_i32 : i32 to vector<8x128xi32>
    %42 = arith.cmpi eq, %0, %41 : vector<8x128xi32>
    %43 = arith.select %42, %37, %35 : vector<8x128xi1>, vector<8x128xf32>
    %44 = math.log %40 : vector<8x128xf32>
    %45 = arith.addf %11, %44 : vector<8x128xf32>
    %46 = arith.subf %43, %45 : vector<8x128xf32>
    %47 = math.exp %46 : vector<8x128xf32>
    %cst_22 = arith.constant 1.000000e+00 : f32
    %48 = vector.broadcast %cst_22 : f32 to vector<8x128xf32>
    %49 = arith.subf %48, %47 : vector<8x128xf32>
    %50 = arith.mulf %49, %49 : vector<8x128xf32>
    %51 = arith.mulf %50, %46 : vector<8x128xf32>
    %cst_23 = arith.constant 0.000000e+00 : f32
    %52 = vector.broadcast %cst_23 : f32 to vector<8x128xf32>
    %53 = arith.subf %52, %51 : vector<8x128xf32>
    %c0_i32_24 = arith.constant 0 : i32
    %54 = arith.cmpi ne, %arg0, %c0_i32_24 : i32
    %55 = arith.extui %54 : i1 to i32
    %c0_i32_25 = arith.constant 0 : i32
    %56 = arith.cmpi ne, %55, %c0_i32_25 : i32
    scf.if %56 {
      %60 = vector.shape_cast %53 : vector<8x128xf32> to vector<1x8x128xf32>
      %cst_28 = arith.constant dense<0.000000e+00> : vector<1xf32>
      %61 = vector.multi_reduction <add>, %60, %cst_28 [1, 2] : vector<1x8x128xf32> to vector<1xf32>
      %62 = vector.shape_cast %61 : vector<1xf32> to vector<1x1x1xf32>
      %63 = vector.extract %62[0, 0, 0] : f32 from vector<1x1x1xf32>
      %64 = vector.broadcast %63 : f32 to vector<1x1xf32>
      %65 = vector.shape_cast %64 : vector<1x1xf32> to vector<1x1xf32>
      %66 = vector.broadcast %65 : vector<1x1xf32> to vector<8x128xf32>
      %c0_29 = arith.constant 0 : index
      %c0_30 = arith.constant 0 : index
      %67 = vector.load %arg3[%c0_29, %c0_30] : memref<8x128xf32, #tpu.memory_space<vmem>>, vector<8x128xf32>
      tpu.vector_store %arg3[%c0_29, %c0_30], %66 {strides = array<i32>} : memref<8x128xf32, #tpu.memory_space<vmem>>, vector<8x128xf32>,
    } else {
    }
    %c0_i32_26 = arith.constant 0 : i32
    %57 = arith.cmpi eq, %arg0, %c0_i32_26 : i32
    %58 = arith.extui %57 : i1 to i32
    %c0_i32_27 = arith.constant 0 : i32
    %59 = arith.cmpi ne, %58, %c0_i32_27 : i32
    scf.if %59 {
      %c1024_i32 = arith.constant 1024 : i32
      %60 = arith.muli %arg0, %c1024_i32 : i32
      %61 = tpu.iota {dimensions = array<i32: 0>} : vector<8x128xi32>
      %62 = tpu.iota {dimensions = array<i32: 1>} : vector<8x128xi32>
      %c128_i32 = arith.constant 128 : i32
      %63 = vector.broadcast %c128_i32 : i32 to vector<8x128xi32>
      %64 = arith.muli %61, %63 : vector<8x128xi32>
      %65 = vector.broadcast %60 : i32 to vector<8x128xi32>
      %66 = arith.addi %65, %64 : vector<8x128xi32>
      %67 = arith.addi %66, %62 : vector<8x128xi32>
      %c8_i32 = arith.constant 8 : i32
      %68 = vector.broadcast %c8_i32 : i32 to vector<8x128xi32>
      %69 = arith.cmpi slt, %67, %68 : vector<8x128xi32>
      %cst_28 = arith.constant 0.000000e+00 : f32
      %70 = vector.broadcast %cst_28 : f32 to vector<8x128xf32>
      %71 = arith.select %69, %53, %70 : vector<8x128xi1>, vector<8x128xf32>
      %72 = vector.shape_cast %71 : vector<8x128xf32> to vector<1x8x128xf32>
      %cst_29 = arith.constant dense<0.000000e+00> : vector<1xf32>
      %73 = vector.multi_reduction <add>, %72, %cst_29 [1, 2] : vector<1x8x128xf32> to vector<1xf32>
      %74 = vector.shape_cast %73 : vector<1xf32> to vector<1x1x1xf32>
      %75 = vector.extract %74[0, 0, 0] : f32 from vector<1x1x1xf32>
      %76 = vector.broadcast %75 : f32 to vector<1x1xf32>
      %77 = vector.shape_cast %76 : vector<1x1xf32> to vector<1x1xf32>
      %78 = vector.broadcast %77 : vector<1x1xf32> to vector<8x128xf32>
      %c0_30 = arith.constant 0 : index
      %c0_31 = arith.constant 0 : index
      %79 = vector.load %arg3[%c0_30, %c0_31] : memref<8x128xf32, #tpu.memory_space<vmem>>, vector<8x128xf32>
      tpu.vector_store %arg3[%c0_30, %c0_31], %78 {strides = array<i32>} : memref<8x128xf32, #tpu.memory_space<vmem>>, vector<8x128xf32>,
    } else {
    }
    return
  }
  func.func @transform_0(%arg0: i32) -> (i32, i32, i32) {
    %c0_i32 = arith.constant 0 : i32
    %c0_i32_0 = arith.constant 0 : i32
    %c0_i32_1 = arith.constant 0 : i32
    return %c0_i32, %arg0, %c0_i32_0 : i32, i32, i32
  }
  func.func @transform_1(%arg0: i32) -> (i32, i32) {
    %c0_i32 = arith.constant 0 : i32
    %c0_i32_0 = arith.constant 0 : i32
    return %arg0, %c0_i32 : i32, i32
  }
  func.func @transform_2(%arg0: i32) -> (i32, i32) {
    %c0_i32 = arith.constant 0 : i32
    %c0_i32_0 = arith.constant 0 : i32
    return %arg0, %c0_i32 : i32, i32
  }
}

</mosaic_0001>

<llo_original>
// kernel: tpu_custom_call.1
$region0: #{tpu_custom_call.1}
  #allocation0 [shape = 'u32[]', space=smem, size = 0x4, offset = 0x4, fixed_abs, tag = 'smem constant byte address 0x4 - core index']
  #allocation1 [shape = 'u32[144,128]{1,0:T(1,128)}', space=vmem, size = 0x12000, scoped, tag = 'internal scratch']
  %s0 = inlined_call_operand.hbm [shape: f32[4,8,128], index: 0, kind: input, shape index: {}]
  %s1 = inlined_call_operand.hbm [shape: s32[8,128], index: 1, kind: input, shape index: {}]
  %s2 = inlined_call_operand.hbm [shape: f32[8,128], index: 2, kind: output, shape index: {}]
  %s3 = sld [smem:[#allocation0]]
  $region34: #{tpu_custom_call.1} parent=0
    _
  %s5 = ssub.s32 1, %s3
  %s6 = scalar_select 0, %s5, %s3
  $region1: #{tpu_custom_call.1} parent=0
    #allocation2 [shape = 'u8[16384]{0}', space=vmem, size = 0x4000, scoped, tag = 'input window, operand 0, single buffered']
    #allocation3 [shape = 's32[1]{0}', space=sflag, size = 0x4, scoped, tag = 'scoped memory for tpu_custom_call.1']
    #allocation4 [shape = 's32[1]{0}', space=sflag, size = 0x4, scoped, tag = 'scoped memory for tpu_custom_call.1']
    #allocation5 [shape = 'u8[4096]{0}', space=vmem, size = 0x1000, scoped, tag = 'input window, operand 1, single buffered']
    #allocation6 [shape = 's32[1]{0}', space=sflag, size = 0x4, scoped, tag = 'scoped memory for tpu_custom_call.1']
    #allocation7 [shape = 'u8[4096]{0}', space=vmem, size = 0x1000, scoped, tag = 'output window, operand 0, single buffered']
    %7 = vsyncpa [#allocation3], 0
    %8 = vsyncpa [#allocation6], 0
    %9 = vsyncpa [#allocation4], 0
    // Predicated region
    $region2: #{tpu_custom_call.1} parent=1 // pred_check
      _
    $region3: #{tpu_custom_call.1} parent=1 // pred_check_branch
      %11 = sbr.rel (0) target = $region5
    $region4: #{tpu_custom_call.1} parent=1 // pred_region
      %s13 = ssub.s32 512, 512
      %14 = vsyncadd [#allocation3], %s13
      %s15 = sshll.u32 [#allocation2], 4
      %s16 = int_to_ptr.vmem [resolvable:$true] %s15
      %21 = dma.hbm_to_vmem [thread:$0]  %s0, 512, %s16, [#allocation3], 128, 128, 8
    $region5: #{tpu_custom_call.1} parent=1 // pred_fallthru
      _
    // Predicated region
    $region6: #{tpu_custom_call.1} parent=1 // pred_check
      _
    $region7: #{tpu_custom_call.1} parent=1 // pred_check_branch
      %23 = sbr.rel (0) target = $region9
    $region8: #{tpu_custom_call.1} parent=1 // pred_region
      %s25 = ssub.s32 128, 128
      %26 = vsyncadd [#allocation6], %s25
      %s28 = sshll.u32 [#allocation5], 4
      %s29 = int_to_ptr.vmem [resolvable:$true] %s28
      %31 = dma.hbm_to_vmem [thread:$0]  %s1, 128, %s29, [#allocation6]
    $region9: #{tpu_custom_call.1} parent=1 // pred_fallthru
      _
    // Predicated region
    $region10: #{tpu_custom_call.1} parent=1 // pred_check
      _
    $region11: #{tpu_custom_call.1} parent=1 // pred_check_branch
      %33 = sbr.rel (0) target = $region13
    $region12: #{tpu_custom_call.1} parent=1 // pred_region
      %34 = dma.done [#allocation3], 512
    $region13: #{tpu_custom_call.1} parent=1 // pred_fallthru
      _
    // Predicated region
    $region14: #{tpu_custom_call.1} parent=1 // pred_check
      _
    $region15: #{tpu_custom_call.1} parent=1 // pred_check_branch
      %36 = sbr.rel (0) target = $region17
    $region16: #{tpu_custom_call.1} parent=1 // pred_region
      %37 = dma.done [#allocation6], 128
    $region17: #{tpu_custom_call.1} parent=1 // pred_fallthru
      _
    %v38 = vld [vmem:[#allocation5] sm:$0xff]
    %v39 = vld [vmem:[#allocation2] sm:$0xff]
    %s40 = scalar_lea.vmem [#allocation2], 8
    %v41 = vld [vmem:[%s40] sm:$0xff]
    %v42 = vmax.f32 %v39, %v41
    %s43 = scalar_lea.vmem [#allocation2], 16
    %v44 = vld [vmem:[%s43] sm:$0xff]
    %v45 = vmax.f32 %v42, %v44
    %s46 = scalar_lea.vmem [#allocation2], 24
    %v47 = vld [vmem:[%s46] sm:$0xff]
    %v48 = vmax.f32 %v45, %v47
    %v49 = vsub.f32 %v39, %v48
    %v50 = vmul.f32 %v49, 1.442695
    %v51 = vpow.pop %v50
    %vm52 = vcmp.eq.s32.totalorder %v38, 0
    %v53 = vsel %vm52, %v39, 0.0
    %v54 = vsub.f32 %v41, %v48
    %v55 = vmul.f32 %v54, 1.442695
    %v56 = vpow.pop %v55
    %v57 = vadd.f32 %v51, %v56
    %vm58 = vcmp.eq.s32.totalorder %v38, 1
    %v59 = vsel %vm58, %v41, %v53
    %v60 = vsub.f32 %v44, %v48
    %v61 = vmul.f32 %v60, 1.442695
    %v62 = vpow.pop %v61
    %v63 = vadd.f32 %v57, %v62
    %vm64 = vcmp.eq.s32.totalorder %v38, 2
    %v65 = vsel %vm64, %v44, %v59
    %v66 = vsub.f32 %v47, %v48
    %v67 = vmul.f32 %v66, 1.442695
    %v68 = vpow.pop %v67
    %v69 = vadd.f32 %v63, %v68
    %vm70 = vcmp.eq.s32.totalorder %v38, 3
    %v71 = vsel %vm70, %v47, %v65
    %v72 = vlog2.pop %v69
    %v73 = vmul.f32 %v72, 0.6931472
    %v74 = vadd.f32 %v48, %v73
    %v75 = vsub.f32 %v71, %v74
    %v76 = vmul.f32 %v75, 1.442695
    %v77 = vpow.pop %v76
    %v78 = vsub.f32 1.0, %v77
    %v79 = vmul.f32 %v78, %v78
    %v80 = vmul.f32 %v79, %v75
    %v81 = vsub.f32 0.0, %v80
    %p82 = scmp.ne.s32.totalorder 0, 0
    // Predicated region
    $region18: #{tpu_custom_call.1} parent=1 // pred_check
      %p83 = pneg %p82
    $region19: #{tpu_custom_call.1} parent=1 // pred_check_branch
      %85 = sbr.rel (%p83) target = $region21
    $region20: #{tpu_custom_call.1} parent=1 // pred_region
      %86 = vadd.xlane.f32.xlu0 %v81
      %v87 = vpop.xlane.xlu0 %86
      %v88 = vrot.slane %v87, 4
      %v89 = vadd.f32 %v87, %v88
      %v90 = vrot.slane %v89, 2
      %v91 = vadd.f32 %v89, %v90
      %v92 = vrot.slane %v91, 1
      %v93 = vadd.f32 %v91, %v92
      %s94 = vtos %v93
      %v95 = vstv %s94
      %96 = vst [vmem:[#allocation7] sm:$0xff] %v95
    $region21: #{tpu_custom_call.1} parent=1 // pred_fallthru
      _
    %p97 = scmp.eq.s32.totalorder 0, 0
    // Predicated region
    $region22: #{tpu_custom_call.1} parent=1 // pred_check
      %p98 = pneg %p97
    $region23: #{tpu_custom_call.1} parent=1 // pred_check_branch
      %100 = sbr.rel (%p98) target = $region25
    $region24: #{tpu_custom_call.1} parent=1 // pred_region
      %s101 = smul.u32 0, 1024
      %v102 = vlaneseq
      %v103 = vshrl.u32 %v102, 7
      %v104 = vlaneseq
      %v105 = vand.u32 %v104, 127
      %v106 = vmul.u32 %v103, 128
      %v107 = vstv %s101
      %v108 = vadd.s32 %v107, %v106
      %v109 = vadd.s32 %v108, %v105
      %vm110 = vcmp.lt.s32.totalorder %v109, 8
      %v111 = vsel %vm110, %v81, 0.0
      %112 = vadd.xlane.f32.xlu0 %v111
      %v113 = vpop.xlane.xlu0 %112
      %v114 = vrot.slane %v113, 4
      %v115 = vadd.f32 %v113, %v114
      %v116 = vrot.slane %v115, 2
      %v117 = vadd.f32 %v115, %v116
      %v118 = vrot.slane %v117, 1
      %v119 = vadd.f32 %v117, %v118
      %s120 = vtos %v119
      %v121 = vstv %s120
      %122 = vst [vmem:[#allocation7] sm:$0xff] %v121
    $region25: #{tpu_custom_call.1} parent=1 // pred_fallthru
      _
    // Predicated region
    $region26: #{tpu_custom_call.1} parent=1 // pred_check
      _
    $region27: #{tpu_custom_call.1} parent=1 // pred_check_branch
      %124 = sbr.rel (0) target = $region29
    $region28: #{tpu_custom_call.1} parent=1 // pred_region
      %s126 = ssub.s32 128, 128
      %127 = vsyncadd [#allocation4], %s126
      %s129 = sshll.u32 [#allocation7], 4
      %s130 = int_to_ptr.vmem [resolvable:$true] %s129
      %132 = dma.vmem_to_hbm [thread:$0]  %s130, 128, %s2, [#allocation4]
    $region29: #{tpu_custom_call.1} parent=1 // pred_fallthru
      _
    // Predicated region
    $region30: #{tpu_custom_call.1} parent=1 // pred_check
      _
    $region31: #{tpu_custom_call.1} parent=1 // pred_check_branch
      %134 = sbr.rel (0) target = $region33
    $region32: #{tpu_custom_call.1} parent=1 // pred_region
      %135 = dma.done [#allocation4], 128
    $region33: #{tpu_custom_call.1} parent=1 // pred_fallthru
      _
    %136 = vsyncpa [#allocation3], 1
    %137 = vsyncpa [#allocation6], 1
    %138 = vsyncpa [#allocation4], 1

</llo_original>
